<compile_context>
chip_gen: v5e
topology: v5e:2x2
jax: 0.10.0
libtpu: 0.0.40
codegen_flags: <defaults>
</compile_context>

<pallas_src>
import functools

import jax
import jax.numpy as jnp
from jax.experimental import pallas as pl
from jax.experimental.pallas import tpu as pltpu

HIDDEN = 24
LANE = 128
SUBLANE = 8
MAX_BATCH_TILE = 2048   # large-B scoring stays in the ~85%-of-roofline tile regime
MIN_SPLIT_TILE = 256    # only split into >=2 grid steps once B is big enough


def _round_up(x, m):
    return ((x + m - 1) // m) * m


def dqn_kernel(x_ref, w1_ref, b1_ref, w2_ref, b2_ref, o_ref):
    # Layer 1: (tb, n_s) @ (n_s, 128) + (1, 128), ReLU.  Padded hidden columns
    # carry zero weights/bias so they contribute exactly nothing downstream.
    h = jnp.dot(x_ref[...], w1_ref[...], preferred_element_type=jnp.float32)
    h = jnp.maximum(h + b1_ref[...], 0.0)
    # Layer 2: (tb, 128) @ (128, n_a) + (1, n_a).  Output block is the true
    # (tb, n_a) shape: the masked narrow store writes only n_a*4 B per row
    # instead of 128*4 B -> no 64x writeback amplification, no post-slice pass.
    out = jnp.dot(h, w2_ref[...], preferred_element_type=jnp.float32)
    o_ref[...] = (out + b2_ref[...]).astype(o_ref.dtype)


def prepare_dqn_params(w1, b1, w2, b2):
    """One-time lane-dense padding of the tiny weights (hidden 24 -> 128).

    Hoisted out of the per-call path: dqn_forward sees already-padded params,
    so the forward emits zero pad/copy HLOs for weights.  n_a is NOT padded.
    """
    h_pad = _round_up(HIDDEN, LANE)                           # 24 -> 128
    w1p = jnp.pad(w1, ((0, 0), (0, h_pad - w1.shape[1])))
    b1p = jnp.pad(b1, ((0, 0), (0, h_pad - b1.shape[1])))
    w2p = jnp.pad(w2, ((0, h_pad - w2.shape[0]), (0, 0)))     # pad hidden dim only
    return w1p, b1p, w2p, b2


@functools.partial(jax.jit, static_argnames=("max_batch_tile",))
def dqn_forward(x, w1p, b1p, w2p, b2, *, max_batch_tile=MAX_BATCH_TILE):
    """DQN forward: ReLU(x @ w1 + b1) @ w2 + b2 on prepared (padded) params.

    x   : (B, n_s) float32
    w1p : (n_s, 128), b1p: (1, 128)   (hidden dim zero-padded 24 -> 128)
    w2p : (128, n_a), b2 : (1, n_a)   (action dim left unpadded)
    """
    B, n_s = x.shape
    h_pad = w1p.shape[1]
    n_a = w2p.shape[1]

    # --- batch tiling ---------------------------------------------------------
    # Pick the step count first so x needs (almost) no pad pass, then round the
    # tile to a sublane multiple.  Force >= 2 steps for mid/large batches so
    # v7x can shard the grid across both TensorCores (harmless on v5e/v6e).
    nsteps = pl.cdiv(B, max_batch_tile)
    if B >= 2 * MIN_SPLIT_TILE:
        nsteps = max(nsteps, 2)
    tb = _round_up(pl.cdiv(B, nsteps), SUBLANE)
    b_pad = _round_up(B, tb)
    xp = jnp.pad(x, ((0, b_pad - B), (0, 0))) if b_pad != B else x
    grid = (b_pad // tb,)

    out = pl.pallas_call(
        dqn_kernel,
        out_shape=jax.ShapeDtypeStruct((b_pad, n_a), jnp.float32),
        grid=grid,
        in_specs=[
            pl.BlockSpec((tb, n_s), lambda i: (i, 0)),      # x: tiled over batch
            pl.BlockSpec((n_s, h_pad), lambda i: (0, 0)),   # weights: VMEM-resident
            pl.BlockSpec((1, h_pad), lambda i: (0, 0)),
            pl.BlockSpec((h_pad, n_a), lambda i: (0, 0)),
            pl.BlockSpec((1, n_a), lambda i: (0, 0)),
        ],
        out_specs=pl.BlockSpec((tb, n_a), lambda i: (i, 0)),
        compiler_params=pltpu.CompilerParams(
            dimension_semantics=("parallel",),   # batch steps are independent
        ),
    )(xp, w1p, b1p, w2p, b2)

    # TODO(synk): fuse the rest of the DQN step (target-net forward, Q[s,a]
    # gather, TD error / argmax action selection) into this same pallas_call;
    # at ~1.9 kFLOP/row this forward alone is purely launch-overhead bound.
    return out if b_pad == B else out[:B]


def init_dqn_params(key, n_s, n_a, hidden=HIDDEN):
    """Deterministic init mimicking PyTorch nn.Linear default (U[-1/sqrt(fan_in), +])."""
    k1, k2, k3, k4 = jax.random.split(key, 4)
    bound1 = 1.0 / jnp.sqrt(jnp.float32(n_s))
    bound2 = 1.0 / jnp.sqrt(jnp.float32(hidden))
    # Stored already transposed relative to PyTorch's (out, in) convention.
    w1 = jax.random.uniform(k1, (n_s, hidden), jnp.float32, -bound1, bound1)
    b1 = jax.random.uniform(k2, (1, hidden), jnp.float32, -bound1, bound1)
    w2 = jax.random.uniform(k3, (hidden, n_a), jnp.float32, -bound2, bound2)
    b2 = jax.random.uniform(k4, (1, n_a), jnp.float32, -bound2, bound2)
    return w1, b1, w2, b2


def dqn_reference(x, w1, b1, w2, b2):
    h = jnp.maximum(x @ w1 + b1, 0.0)
    return h @ w2 + b2


if __name__ == "__main__":
    key = jax.random.PRNGKey(0)
    n_s, n_a, batch = 4, 2, 8

    kp, kx = jax.random.split(key)
    w1, b1, w2, b2 = init_dqn_params(kp, n_s, n_a)
    params = prepare_dqn_params(w1, b1, w2, b2)   # one-time padding, not per call
    x = jax.random.normal(kx, (batch, n_s), jnp.float32)

    out = dqn_forward(x, *params)
    jax.block_until_ready(out)

    ref = dqn_reference(x, w1, b1, w2, b2)
    assert out.shape == (batch, n_a)
    assert jnp.allclose(out, ref, atol=1e-5, rtol=1e-5)

    # Multi-step grid path (B=2000 -> 2 balanced steps of tb=1000, no x padding).
    x_big = jax.random.normal(jax.random.PRNGKey(1), (2000, n_s), jnp.float32)
    out_big = dqn_forward(x_big, *params)
    jax.block_until_ready(out_big)
    assert out_big.shape == (2000, n_a)
    assert jnp.allclose(out_big, dqn_reference(x_big, w1, b1, w2, b2),
                        atol=1e-5, rtol=1e-5)

    # Non-tile-multiple batch exercises the (rare) batch-padding path.
    x_odd = jax.random.normal(jax.random.PRNGKey(2), (13, n_s), jnp.float32)
    out_odd = dqn_forward(x_odd, *params)
    jax.block_until_ready(out_odd)
    assert out_odd.shape == (13, n_a)
    assert jnp.allclose(out_odd, dqn_reference(x_odd, w1, b1, w2, b2),
                        atol=1e-5, rtol=1e-5)

    print("KERNEL_OK")
</pallas_src>

<mosaic_0001>
module attributes {stable_mosaic.version = 11 : i64} {
  func.func @dqn_kernel(%arg0: i32, %arg1: memref<8x4xf32, #tpu.memory_space<vmem>>, %arg2: memref<4x128xf32, #tpu.memory_space<vmem>>, %arg3: memref<1x128xf32, #tpu.memory_space<vmem>>, %arg4: memref<128x2xf32, #tpu.memory_space<vmem>>, %arg5: memref<1x2xf32, #tpu.memory_space<vmem>>, %arg6: memref<8x2xf32, #tpu.memory_space<vmem>>) attributes {dimension_semantics = [#tpu.dimension_semantics<parallel>], iteration_bounds = array<i64: 1>, scalar_prefetch = 0 : i64, scratch_operands = 0 : i64, tpu.core_type = #tpu.core_type<tc>, window_params = [{transform_indices = @transform_0, window_bounds = array<i64: 8, 4>}, {pipeline_mode = #tpu.pipeline_mode<synchronous>, transform_indices = @transform_1, window_bounds = array<i64: 4, 128>}, {pipeline_mode = #tpu.pipeline_mode<synchronous>, transform_indices = @transform_2, window_bounds = array<i64: 1, 128>}, {pipeline_mode = #tpu.pipeline_mode<synchronous>, transform_indices = @transform_3, window_bounds = array<i64: 128, 2>}, {pipeline_mode = #tpu.pipeline_mode<synchronous>, transform_indices = @transform_4, window_bounds = array<i64: 1, 2>}, {transform_indices = @transform_5, window_bounds = array<i64: 8, 2>}]} {
    %c0 = arith.constant 0 : index
    %c0_0 = arith.constant 0 : index
    %0 = vector.load %arg1[%c0, %c0_0] : memref<8x4xf32, #tpu.memory_space<vmem>>, vector<8x4xf32>
    %c0_1 = arith.constant 0 : index
    %c0_2 = arith.constant 0 : index
    %1 = vector.load %arg2[%c0_1, %c0_2] : memref<4x128xf32, #tpu.memory_space<vmem>>, vector<4x128xf32>
    %cst = arith.constant dense<0.000000e+00> : vector<8x128xf32>
    %2 = tpu.matmul %0, %1, %cst {dimension_numbers = #tpu.dot_dimension_numbers<[1], [0], [0], [1], [0, 0, 1, 1], [], []>} : vector<8x4xf32>, vector<4x128xf32>, vector<8x128xf32> -> vector<8x128xf32>
    %c0_3 = arith.constant 0 : index
    %c0_4 = arith.constant 0 : index
    %3 = vector.load %arg3[%c0_3, %c0_4] : memref<1x128xf32, #tpu.memory_space<vmem>>, vector<1x128xf32>
    %4 = vector.broadcast %3 : vector<1x128xf32> to vector<8x128xf32>
    %5 = arith.addf %2, %4 : vector<8x128xf32>
    %cst_5 = arith.constant 0.000000e+00 : f32
    %6 = vector.broadcast %cst_5 : f32 to vector<8x128xf32>
    %7 = arith.maximumf %5, %6 : vector<8x128xf32>
    %c0_6 = arith.constant 0 : index
    %c0_7 = arith.constant 0 : index
    %8 = vector.load %arg4[%c0_6, %c0_7] : memref<128x2xf32, #tpu.memory_space<vmem>>, vector<128x2xf32>
    %cst_8 = arith.constant dense<0.000000e+00> : vector<8x2xf32>
    %9 = tpu.matmul %7, %8, %cst_8 {dimension_numbers = #tpu.dot_dimension_numbers<[1], [0], [0], [1], [0, 0, 1, 1], [], []>} : vector<8x128xf32>, vector<128x2xf32>, vector<8x2xf32> -> vector<8x2xf32>
    %c0_9 = arith.constant 0 : index
    %c0_10 = arith.constant 0 : index
    %10 = vector.load %arg5[%c0_9, %c0_10] : memref<1x2xf32, #tpu.memory_space<vmem>>, vector<1x2xf32>
    %11 = vector.broadcast %10 : vector<1x2xf32> to vector<8x2xf32>
    %12 = arith.addf %9, %11 : vector<8x2xf32>
    %c0_11 = arith.constant 0 : index
    %c0_12 = arith.constant 0 : index
    %13 = vector.load %arg6[%c0_11, %c0_12] : memref<8x2xf32, #tpu.memory_space<vmem>>, vector<8x2xf32>
    tpu.vector_store %arg6[%c0_11, %c0_12], %12 {strides = array<i32>} : memref<8x2xf32, #tpu.memory_space<vmem>>, vector<8x2xf32>,
    return
  }
  func.func @transform_0(%arg0: i32) -> (i32, i32) {
    %c0_i32 = arith.constant 0 : i32
    %c0_i32_0 = arith.constant 0 : i32
    return %arg0, %c0_i32 : i32, i32
  }
  func.func @transform_1(%arg0: i32) -> (i32, i32) {
    %c0_i32 = arith.constant 0 : i32
    %c0_i32_0 = arith.constant 0 : i32
    %c0_i32_1 = arith.constant 0 : i32
    return %c0_i32, %c0_i32_0 : i32, i32
  }
  func.func @transform_2(%arg0: i32) -> (i32, i32) {
    %c0_i32 = arith.constant 0 : i32
    %c0_i32_0 = arith.constant 0 : i32
    %c0_i32_1 = arith.constant 0 : i32
    return %c0_i32, %c0_i32_0 : i32, i32
  }
  func.func @transform_3(%arg0: i32) -> (i32, i32) {
    %c0_i32 = arith.constant 0 : i32
    %c0_i32_0 = arith.constant 0 : i32
    %c0_i32_1 = arith.constant 0 : i32
    return %c0_i32, %c0_i32_0 : i32, i32
  }
  func.func @transform_4(%arg0: i32) -> (i32, i32) {
    %c0_i32 = arith.constant 0 : i32
    %c0_i32_0 = arith.constant 0 : i32
    %c0_i32_1 = arith.constant 0 : i32
    return %c0_i32, %c0_i32_0 : i32, i32
  }
  func.func @transform_5(%arg0: i32) -> (i32, i32) {
    %c0_i32 = arith.constant 0 : i32
    %c0_i32_0 = arith.constant 0 : i32
    return %arg0, %c0_i32 : i32, i32
  }
}

</mosaic_0001>

<llo_original>
// kernel: dqn_forward.1
$region0: #{dqn_forward.1}
  #allocation0 [shape = 'u32[]', space=smem, size = 0x4, offset = 0x4, fixed_abs, tag = 'smem constant byte address 0x4 - core index']
  #allocation1 [shape = 'u32[72,128]{1,0:T(1,128)}', space=vmem, size = 0x9000, scoped, tag = 'internal scratch']
  %s0 = inlined_call_operand.vmem [shape: f32[8,4], index: 0, kind: input, shape index: {}]
  %s1 = inlined_call_operand.vmem [shape: f32[4,128], index: 1, kind: input, shape index: {}]
  %s2 = inlined_call_operand.vmem [shape: f32[1,128], index: 2, kind: input, shape index: {}]
  %s3 = inlined_call_operand.vmem [shape: f32[128,2], index: 3, kind: input, shape index: {}]
  %s4 = inlined_call_operand.vmem [shape: f32[1,2], index: 4, kind: input, shape index: {}]
  %s5 = inlined_call_operand.vmem [shape: f32[8,2], index: 5, kind: output, shape index: {}]
  %s6 = sld [smem:[#allocation0]]
  $region30: #{dqn_forward.1} parent=0
    _
  %s8 = ssub.s32 1, %s6
  %s9 = scalar_select 0, %s8, %s6
  // Predicated region
  $region2: #{dqn_forward.1} parent=0 // pred_check
    _
  $region3: #{dqn_forward.1} parent=0 // pred_check_branch
    %11 = sbr.rel (0) target = $region5
  $region4: #{dqn_forward.1} parent=0 // pred_region
    _
  $region5: #{dqn_forward.1} parent=0 // pred_fallthru
    _
  // Predicated region
  $region6: #{dqn_forward.1} parent=0 // pred_check
    _
  $region7: #{dqn_forward.1} parent=0 // pred_check_branch
    %13 = sbr.rel (0) target = $region9
  $region8: #{dqn_forward.1} parent=0 // pred_region
    _
  $region9: #{dqn_forward.1} parent=0 // pred_fallthru
    _
  // Predicated region
  $region10: #{dqn_forward.1} parent=0 // pred_check
    _
  $region11: #{dqn_forward.1} parent=0 // pred_check_branch
    %15 = sbr.rel (0) target = $region13
  $region12: #{dqn_forward.1} parent=0 // pred_region
    _
  $region13: #{dqn_forward.1} parent=0 // pred_fallthru
    _
  // Predicated region
  $region14: #{dqn_forward.1} parent=0 // pred_check
    _
  $region15: #{dqn_forward.1} parent=0 // pred_check_branch
    %17 = sbr.rel (0) target = $region17
  $region16: #{dqn_forward.1} parent=0 // pred_region
    _
  $region17: #{dqn_forward.1} parent=0 // pred_fallthru
    _
  // Predicated region
  $region18: #{dqn_forward.1} parent=0 // pred_check
    _
  $region19: #{dqn_forward.1} parent=0 // pred_check_branch
    %19 = sbr.rel (0) target = $region21
  $region20: #{dqn_forward.1} parent=0 // pred_region
    _
  $region21: #{dqn_forward.1} parent=0 // pred_fallthru
    _
  %v20 = vld [vmem:[%s0] sm:$0xff]
  %v21 = vld [vmem:[%s1] sm:$0xf]
  %v22 = vld [vmem:[%s2] sm:$0x1]
  %v24 = vperm.slane %v22, 0
  %vm26 = vcmask 31744
  %v28 = vsel %vm26, %v20, 0
  %vm30 = vcmask 1043456
  %v32 = vsel %vm30, %v21, 0
  %34 = vmatpush.msra.mxu0 0.0
  %35 = vmatpush.msra.mxu0 0.0
  %36 = vmatpush.msra.mxu0 0.0
  %37 = vmatpush.msra.mxu0 0.0
  %38 = vmatpush.msra.mxu0 0.0
  %39 = vmatpush.msra.mxu0 0.0
  %40 = vmatpush.msra.mxu0 0.0
  %41 = vmatpush.msra.mxu0 0.0
  %42 = vmatpush.msra.mxu0 0.0
  %43 = vmatpush.msra.mxu0 0.0
  %44 = vmatpush.msra.mxu0 0.0
  %45 = vmatpush.msra.mxu0 0.0
  %46 = vmatpush.msra.mxu0 0.0
  %47 = vmatpush.msra.mxu0 0.0
  %48 = vmatpush.msra.mxu0 0.0
  %49 = vmatpush.msra.mxu0 %v32
  %50 = vmatmul.f32.gmra.mxu0 %v28
  %v51 = vpop.f32.mrf.mxu0
  %v52 = vadd.f32 %v24, %v51
  %53 = vdwg.mxu0
  %v54 = vmax.f32 %v52, 0.0
  %v55 = vld [vmem:[%s3] sm:$0xff]
  %v56 = vld [vmem:[%s3 + $0x8] sm:$0xff]
  %v57 = vld [vmem:[%s3 + $0x10] sm:$0xff]
  %v58 = vld [vmem:[%s3 + $0x18] sm:$0xff]
  %v59 = vld [vmem:[%s3 + $0x20] sm:$0xff]
  %v60 = vld [vmem:[%s3 + $0x28] sm:$0xff]
  %v61 = vld [vmem:[%s3 + $0x30] sm:$0xff]
  %v62 = vld [vmem:[%s3 + $0x38] sm:$0xff]
  %v63 = vld [vmem:[%s3 + $0x40] sm:$0xff]
  %v64 = vld [vmem:[%s3 + $0x48] sm:$0xff]
  %v65 = vld [vmem:[%s3 + $0x50] sm:$0xff]
  %v66 = vld [vmem:[%s3 + $0x58] sm:$0xff]
  %v67 = vld [vmem:[%s3 + $0x60] sm:$0xff]
  %v68 = vld [vmem:[%s3 + $0x68] sm:$0xff]
  %v69 = vld [vmem:[%s3 + $0x70] sm:$0xff]
  %v70 = vld [vmem:[%s3 + $0x78] sm:$0xff]
  %v71 = vld [vmem:[%s4] sm:$0x1]
  %v73 = vperm.slane %v71, 0
  %75 = vmatpush.msra.mxu0 %v70
  %76 = vmatpush.msra.mxu0 %v69
  %77 = vmatpush.msra.mxu0 %v68
  %78 = vmatpush.msra.mxu0 %v67
  %79 = vmatpush.msra.mxu0 %v66
  %80 = vmatpush.msra.mxu0 %v65
  %81 = vmatpush.msra.mxu0 %v64
  %82 = vmatpush.msra.mxu0 %v63
  %83 = vmatpush.msra.mxu0 %v62
  %84 = vmatpush.msra.mxu0 %v61
  %85 = vmatpush.msra.mxu0 %v60
  %86 = vmatpush.msra.mxu0 %v59
  %87 = vmatpush.msra.mxu0 %v58
  %88 = vmatpush.msra.mxu0 %v57
  %89 = vmatpush.msra.mxu0 %v56
  %90 = vmatpush.msra.mxu0 %v55
  %91 = vmatmul.f32.gmra.mxu0 %v54
  %v92 = vpop.f32.mrf.mxu0
  %v93 = vadd.f32 %v73, %v92
  %94 = vdwg.mxu0
  %vm95 = vcmask 15360
  %96 = vst.msk [vmem:[%s5] sm:$0xff] %vm95, %v93
  // Predicated region
  $region22: #{dqn_forward.1} parent=0 // pred_check
    _
  $region23: #{dqn_forward.1} parent=0 // pred_check_branch
    %98 = sbr.rel (0) target = $region25
  $region24: #{dqn_forward.1} parent=0 // pred_region
    _
  $region25: #{dqn_forward.1} parent=0 // pred_fallthru
    _
  // Predicated region
  $region26: #{dqn_forward.1} parent=0 // pred_check
    _
  $region27: #{dqn_forward.1} parent=0 // pred_check_branch
    %100 = sbr.rel (0) target = $region29
  $region28: #{dqn_forward.1} parent=0 // pred_region
    _
  $region29: #{dqn_forward.1} parent=0 // pred_fallthru
    _

</llo_original>
